<compile_context>
chip_gen: v7x
topology: tpu7x:2x2x1
jax: 0.10.0
libtpu: 0.0.40
codegen_flags: <defaults>
</compile_context>

<pallas_src>
import functools

import jax
import jax.numpy as jnp
from jax import lax
from jax.experimental import pallas as pl
from jax.experimental.pallas import tpu as pltpu


# ----------------------------------------------------------------------------
# Kernel
# ----------------------------------------------------------------------------
def _lsce_kernel(preds_ref, tgt_ref, out_ref, *, epsilon: float,
                 n_rows: int, n_classes: int):
    i = pl.program_id(0)

    x = preds_ref[...].astype(jnp.float32)                     # (TN, C)
    t = tgt_ref[...]                                           # (TN, 1) int32
    tn, c = x.shape

    # Row-wise numerically stable log-sum-exp.
    m = jnp.max(x, axis=-1, keepdims=True)                      # lane reduce 1
    lse = m + jnp.log(jnp.sum(jnp.exp(x - m), axis=-1, keepdims=True))  # 2

    # Fused smoothing + NLL term via a single weighted masked lane reduction:
    #   per_row = lse - sum_c x_c * (eps/C + (1-eps)*[c == target])
    cls = lax.broadcasted_iota(jnp.int32, (tn, c), 1)
    base_w = jnp.float32(epsilon / n_classes)
    w = jnp.where(cls == t, base_w + jnp.float32(1.0 - epsilon), base_w)
    weighted = jnp.sum(x * w, axis=-1, keepdims=True)            # lane reduce 3

    per_row = lse - weighted

    # Zero rows past the true end (last tile may be padded); per-row values are
    # independent so garbage in padded rows cannot contaminate valid rows.
    row_ids = i * tn + lax.broadcasted_iota(jnp.int32, (tn, 1), 0)
    out_ref[...] = jnp.where(row_ids < n_rows, per_row, 0.0)


# ----------------------------------------------------------------------------
# VMEM-aware tile sizing
# ----------------------------------------------------------------------------
def _auto_block_rows(c: int, itemsize: int):
    # Sublane packing: f32 -> 8, bf16 -> 16, int8/fp8 -> 32.
    sublane = 8 * max(1, 4 // itemsize)
    # Keep the per-tile f32 working set (~3-4 full-tile temporaries of
    # tn*C*4 bytes each) around <=4 MiB so that, together with the
    # double-buffered input blocks, it fits comfortably on v7x (64 MiB
    # physical VMEM) as well as v5e/v6e, while still producing >= ~1-2 MiB
    # HBM blocks for modest C to stay near the HBM roofline.
    f32_tile_budget = 4 * 1024 * 1024
    tn = (f32_tile_budget // (c * 4)) // sublane * sublane
    tn = max(sublane, min(tn, 4096))
    return tn, sublane


# ----------------------------------------------------------------------------
# Wrapper
# ----------------------------------------------------------------------------
@functools.partial(jax.jit,
                   static_argnames=("epsilon", "reduction", "block_rows"))
def label_smoothing_cross_entropy(preds, target, *, epsilon: float = 0.1,
                                  reduction: str = "mean",
                                  block_rows=None):
    """preds: (N, C) logits (f32 or bf16), target: (N,) int class ids."""
    if reduction not in ("mean", "sum", "none"):
        raise ValueError("reduction must be 'mean', 'sum' or 'none'")

    n, c = preds.shape
    itemsize = jnp.dtype(preds.dtype).itemsize
    auto_tn, sublane = _auto_block_rows(c, itemsize)

    if block_rows is None:
        tn = auto_tn
    else:
        assert block_rows % sublane == 0, (
            f"block_rows must be a multiple of {sublane} for dtype {preds.dtype}")
        tn = block_rows
    # Never tile wider than the (sublane-rounded) number of rows.
    tn = min(tn, pl.cdiv(n, sublane) * sublane)

    num_tiles = pl.cdiv(n, tn)
    n_pad = num_tiles * tn
    grid = (num_tiles,)

    tgt2d = target.reshape(n, 1).astype(jnp.int32)   # (N, 1) for VMEM layout

    kernel = functools.partial(
        _lsce_kernel,
        epsilon=float(epsilon),
        n_rows=n,
        n_classes=c,
    )

    out = pl.pallas_call(
        kernel,
        out_shape=jax.ShapeDtypeStruct((n_pad, 1), jnp.float32),
        grid=grid,
        in_specs=[
            pl.BlockSpec((tn, c), lambda i: (i, 0)),   # logits tile (full C, lane-dense)
            pl.BlockSpec((tn, 1), lambda i: (i, 0)),   # targets tile (tiny DMA)
        ],
        # Each grid step owns a distinct per-row output block -> no cross-step
        # state, so the grid axis is truly parallel (v7x can use both TCs).
        out_specs=pl.BlockSpec((tn, 1), lambda i: (i, 0)),
        compiler_params=pltpu.CompilerParams(
            dimension_semantics=("parallel",),
            vmem_limit_bytes=48 * 1024 * 1024,
        ),
        cost_estimate=pl.CostEstimate(
            flops=6 * n * c,
            transcendentals=n * c + n,
            bytes_accessed=n * c * itemsize + n * 4 + n_pad * 4,
        ),
    )(preds, tgt2d)

    per_row = out[:n, 0]
    if reduction == "mean":
        return per_row.mean()
    if reduction == "sum":
        return per_row.sum()
    return per_row


# ----------------------------------------------------------------------------
# Demo / correctness check
# ----------------------------------------------------------------------------
if __name__ == "__main__":
    EPS = 0.1

    def ref_loss(preds, target, eps, reduction):
        lp = jax.nn.log_softmax(preds.astype(jnp.float32), axis=-1)
        n_cls = preds.shape[-1]
        smooth = -lp.sum(axis=-1)
        nll = -jnp.take_along_axis(lp, target[:, None], axis=-1)[:, 0]
        if reduction == "mean":
            smooth, nll = smooth.mean(), nll.mean()
        elif reduction == "sum":
            smooth, nll = smooth.sum(), nll.sum()
        return eps * smooth / n_cls + (1.0 - eps) * nll

    key = jax.random.PRNGKey(0)
    k1, k2, k3, k4 = jax.random.split(key, 4)

    # (1) f32 logits, multi-tile grid (block_rows=8 -> grid=(2,)), mean & sum.
    N, C = 16, 128
    preds = jax.random.normal(k1, (N, C), dtype=jnp.float32)
    target = jax.random.randint(k2, (N,), 0, C, dtype=jnp.int32)

    out_mean = jax.block_until_ready(
        label_smoothing_cross_entropy(preds, target, epsilon=EPS,
                                      reduction="mean", block_rows=8))
    out_sum = jax.block_until_ready(
        label_smoothing_cross_entropy(preds, target, epsilon=EPS,
                                      reduction="sum", block_rows=8))
    assert out_mean.shape == ()
    assert jnp.allclose(out_mean, ref_loss(preds, target, EPS, "mean"),
                        atol=1e-5, rtol=1e-5), out_mean
    assert jnp.allclose(out_sum, ref_loss(preds, target, EPS, "sum"),
                        atol=1e-4, rtol=1e-5), out_sum

    # (2) auto (VMEM-aware) tile size, ragged N (padded last tile), 'none'.
    N2 = 12
    preds2 = jax.random.normal(k3, (N2, C), dtype=jnp.float32)
    target2 = jax.random.randint(k4, (N2,), 0, C, dtype=jnp.int32)
    out_none = jax.block_until_ready(
        label_smoothing_cross_entropy(preds2, target2, epsilon=EPS,
                                      reduction="none"))
    assert out_none.shape == (N2,)
    assert jnp.allclose(out_none, ref_loss(preds2, target2, EPS, "none"),
                        atol=1e-5, rtol=1e-5)

    # (3) bf16 logits path: no wrapper pre-cast (half HBM traffic), per-tile
    #     in-kernel upcast; sublane alignment is 16 for bf16.
    preds_bf16 = preds.astype(jnp.bfloat16)
    out_bf16 = jax.block_until_ready(
        label_smoothing_cross_entropy(preds_bf16, target, epsilon=EPS,
                                      reduction="mean", block_rows=16))
    assert jnp.allclose(out_bf16, ref_loss(preds_bf16, target, EPS, "mean"),
                        atol=1e-3, rtol=1e-3), out_bf16

    print("KERNEL_OK")
</pallas_src>

<mosaic_0001>
module attributes {stable_mosaic.version = 11 : i64} {
  func.func @_lsce_kernel(%arg0: i32, %arg1: memref<8x128xf32, #tpu.memory_space<vmem>>, %arg2: memref<8x1xi32, #tpu.memory_space<vmem>>, %arg3: memref<8x1xf32, #tpu.memory_space<vmem>>) attributes {dimension_semantics = [#tpu.dimension_semantics<parallel>], iteration_bounds = array<i64: 2>, scalar_prefetch = 0 : i64, scratch_operands = 0 : i64, tpu.core_type = #tpu.core_type<tc>, window_params = [{transform_indices = @transform_0, window_bounds = array<i64: 8, 128>}, {transform_indices = @transform_1, window_bounds = array<i64: 8, 1>}, {transform_indices = @transform_2, window_bounds = array<i64: 8, 1>}]} {
    %c0 = arith.constant 0 : index
    %c0_0 = arith.constant 0 : index
    %0 = vector.load %arg1[%c0, %c0_0] : memref<8x128xf32, #tpu.memory_space<vmem>>, vector<8x128xf32>
    %c0_1 = arith.constant 0 : index
    %c0_2 = arith.constant 0 : index
    %1 = vector.load %arg2[%c0_1, %c0_2] : memref<8x1xi32, #tpu.memory_space<vmem>>, vector<8x1xi32>
    %cst = arith.constant dense<0xFF800000> : vector<8xf32>
    %2 = vector.multi_reduction <maximumf>, %0, %cst [1] : vector<8x128xf32> to vector<8xf32>
    %3 = vector.shape_cast %2 : vector<8xf32> to vector<8x1xf32>
    %4 = vector.broadcast %3 : vector<8x1xf32> to vector<8x128xf32>
    %5 = arith.subf %0, %4 : vector<8x128xf32>
    %6 = math.exp %5 : vector<8x128xf32>
    %cst_3 = arith.constant dense<0.000000e+00> : vector<8xf32>
    %7 = vector.multi_reduction <add>, %6, %cst_3 [1] : vector<8x128xf32> to vector<8xf32>
    %8 = vector.shape_cast %7 : vector<8xf32> to vector<8x1xf32>
    %9 = math.log %8 : vector<8x1xf32>
    %10 = arith.addf %3, %9 : vector<8x1xf32>
    %11 = tpu.iota {dimensions = array<i32: 1>} : vector<8x128xi32>
    %12 = vector.broadcast %1 : vector<8x1xi32> to vector<8x128xi32>
    %13 = arith.cmpi eq, %11, %12 : vector<8x128xi32>
    %cst_4 = arith.constant 7.812500e-04 : f32
    %cst_5 = arith.constant 0.899999976 : f32
    %14 = arith.addf %cst_4, %cst_5 : f32
    %cst_6 = arith.constant 7.812500e-04 : f32
    %15 = vector.broadcast %14 : f32 to vector<8x128xf32>
    %16 = vector.broadcast %cst_6 : f32 to vector<8x128xf32>
    %17 = arith.select %13, %15, %16 : vector<8x128xi1>, vector<8x128xf32>
    %18 = arith.mulf %0, %17 : vector<8x128xf32>
    %cst_7 = arith.constant dense<0.000000e+00> : vector<8xf32>
    %19 = vector.multi_reduction <add>, %18, %cst_7 [1] : vector<8x128xf32> to vector<8xf32>
    %20 = vector.shape_cast %19 : vector<8xf32> to vector<8x1xf32>
    %21 = arith.subf %10, %20 : vector<8x1xf32>
    %c8_i32 = arith.constant 8 : i32
    %22 = arith.muli %arg0, %c8_i32 : i32
    %23 = tpu.iota {dimensions = array<i32: 0>} : vector<8x1xi32>
    %24 = vector.broadcast %22 : i32 to vector<8x1xi32>
    %25 = arith.addi %24, %23 : vector<8x1xi32>
    %c16_i32 = arith.constant 16 : i32
    %26 = vector.broadcast %c16_i32 : i32 to vector<8x1xi32>
    %27 = arith.cmpi slt, %25, %26 : vector<8x1xi32>
    %cst_8 = arith.constant 0.000000e+00 : f32
    %28 = vector.broadcast %cst_8 : f32 to vector<8x1xf32>
    %29 = arith.select %27, %21, %28 : vector<8x1xi1>, vector<8x1xf32>
    %c0_9 = arith.constant 0 : index
    %c0_10 = arith.constant 0 : index
    %30 = vector.load %arg3[%c0_9, %c0_10] : memref<8x1xf32, #tpu.memory_space<vmem>>, vector<8x1xf32>
    tpu.vector_store %arg3[%c0_9, %c0_10], %29 {strides = array<i32>} : memref<8x1xf32, #tpu.memory_space<vmem>>, vector<8x1xf32>,
    return
  }
  func.func @transform_0(%arg0: i32) -> (i32, i32) {
    %c0_i32 = arith.constant 0 : i32
    %c0_i32_0 = arith.constant 0 : i32
    return %arg0, %c0_i32 : i32, i32
  }
  func.func @transform_1(%arg0: i32) -> (i32, i32) {
    %c0_i32 = arith.constant 0 : i32
    %c0_i32_0 = arith.constant 0 : i32
    return %arg0, %c0_i32 : i32, i32
  }
  func.func @transform_2(%arg0: i32) -> (i32, i32) {
    %c0_i32 = arith.constant 0 : i32
    %c0_i32_0 = arith.constant 0 : i32
    return %arg0, %c0_i32 : i32, i32
  }
}

</mosaic_0001>

<llo_original>
// kernel: label_smoothing_cross_entropy.1
$region0: #{label_smoothing_cross_entropy.1}
  #allocation0 [shape = 'u32[]', space=smem, size = 0x4, offset = 0x4, fixed_abs, tag = 'smem constant byte address 0x4 - core index']
  #allocation1 [shape = 'u32[144,128]{1,0:T(1,128)}', space=vmem, size = 0x12000, scoped, tag = 'internal scratch']
  %s0 = inlined_call_operand.vmem [shape: f32[16,128], index: 0, kind: input, shape index: {}]
  %s1 = inlined_call_operand.vmem [shape: s32[16,1], index: 1, kind: input, shape index: {}]
  %s2 = inlined_call_operand.vmem [shape: f32[16,1], index: 2, kind: output, shape index: {}]
  %s3 = sld [smem:[#allocation0]]
  $region41: #{label_smoothing_cross_entropy.1} parent=0
    _
  %s5 = ssub.s32 1, %s3
  %s6 = scalar_select 0, %s5, %s3
  loop: start=0, step=1, limit=4
  $region2: #{label_smoothing_cross_entropy.1} parent=0 // loop_pre_header
    _
  $region3: #{label_smoothing_cross_entropy.1} parent=0 // loop_header
    %s8 = sphi 0, %s12
    %p9 = scmp.ge.s32.totalorder %s8, 4
    %s18 = sphi 0, %s20
    %s21 = sphi 0, %s18
    %s22 = sphi 0, %s21
    %s38 = sphi 0, %s22
    %s44 = sphi 0, %s46
    %s47 = sphi 0, %s44
    %s48 = sphi 0, %s47
    %s64 = sphi 0, %s48
    %s70 = sphi 0, %s72
    %s73 = sphi 0, %s70
    %s74 = sphi 0, %s73
    %s90 = sphi 0, %s74
  $region4: #{label_smoothing_cross_entropy.1} parent=0 // loop_header_branch
    %11 = sbr.rel (%p9) target = $region8
  $region5: #{label_smoothing_cross_entropy.1} parent=0 // loop_body
    %s13 = ssub.s32 %s8, 1
    %s14 = ssub.s32 %s8, 2
    %s15 = sadd.s32 %s8, 1
    %s16 = ssub.s32 %s8, %s15
    %p17 = scmp.eq.s32.totalorder %s16, 0
    %s19 = sadd.s32 %s18, 1
    %s20 = scalar_select %p17, %s18, %s19
    %p23 = pneg %p17
    %p24 = scmp.eq.s32.totalorder %s8, 1
    %p25 = por %p23, %p24
    %p26 = scmp.ne.s32.totalorder %s18, %s21
    %p27 = scmp.eq.s32.totalorder %s8, 0
    %p28 = por %p26, %p27
    %p29 = scmp.ne.s32.totalorder %s18, %s21
    %p30 = scmp.eq.s32.totalorder %s13, 1
    %p31 = por %p29, %p30
    %p32 = scmp.ne.s32.totalorder %s21, %s22
    %p33 = scmp.eq.s32.totalorder %s13, 0
    %p34 = por %p32, %p33
    %p35 = scmp.ne.s32.totalorder %s21, %s22
    %p36 = scmp.eq.s32.totalorder %s14, 1
    %p37 = por %p35, %p36
    %p39 = scmp.ne.s32.totalorder %s22, %s38
    %p40 = scmp.eq.s32.totalorder %s14, 0
    %p41 = por %p39, %p40
    %s42 = ssub.s32 %s8, %s15
    %p43 = scmp.eq.s32.totalorder %s42, 0
    %s45 = sadd.s32 %s44, 1
    %s46 = scalar_select %p43, %s44, %s45
    %p49 = pneg %p43
    %p50 = scmp.eq.s32.totalorder %s8, 1
    %p51 = por %p49, %p50
    %p52 = scmp.ne.s32.totalorder %s44, %s47
    %p53 = scmp.eq.s32.totalorder %s8, 0
    %p54 = por %p52, %p53
    %p55 = scmp.ne.s32.totalorder %s44, %s47
    %p56 = scmp.eq.s32.totalorder %s13, 1
    %p57 = por %p55, %p56
    %p58 = scmp.ne.s32.totalorder %s47, %s48
    %p59 = scmp.eq.s32.totalorder %s13, 0
    %p60 = por %p58, %p59
    %p61 = scmp.ne.s32.totalorder %s47, %s48
    %p62 = scmp.eq.s32.totalorder %s14, 1
    %p63 = por %p61, %p62
    %p65 = scmp.ne.s32.totalorder %s48, %s64
    %p66 = scmp.eq.s32.totalorder %s14, 0
    %p67 = por %p65, %p66
    %s68 = ssub.s32 %s8, %s15
    %p69 = scmp.eq.s32.totalorder %s68, 0
    %s71 = sadd.s32 %s70, 1
    %s72 = scalar_select %p69, %s70, %s71
    %p75 = pneg %p69
    %p76 = scmp.eq.s32.totalorder %s8, 1
    %p77 = por %p75, %p76
    %p78 = scmp.ne.s32.totalorder %s70, %s73
    %p79 = scmp.eq.s32.totalorder %s8, 0
    %p80 = por %p78, %p79
    %p81 = scmp.ne.s32.totalorder %s70, %s73
    %p82 = scmp.eq.s32.totalorder %s13, 1
    %p83 = por %p81, %p82
    %p84 = scmp.ne.s32.totalorder %s73, %s74
    %p85 = scmp.eq.s32.totalorder %s13, 0
    %p86 = por %p84, %p85
    %p87 = scmp.ne.s32.totalorder %s73, %s74
    %p88 = scmp.eq.s32.totalorder %s14, 1
    %p89 = por %p87, %p88
    %p91 = scmp.ne.s32.totalorder %s74, %s90
    %p92 = scmp.eq.s32.totalorder %s14, 0
    %p93 = por %p91, %p92
    %p94 = scmp.le.s32.totalorder 1, %s8
    %p95 = scmp.lt.s32.totalorder %s8, 3
    %p96 = pnand %p94, %p95
    %p97 = pneg %p96
    // Predicated region
    $region9: #{label_smoothing_cross_entropy.1} parent=5 // pred_check
      _
    $region10: #{label_smoothing_cross_entropy.1} parent=5 // pred_check_branch
      %99 = sbr.rel (%p96) target = $region12
    $region11: #{label_smoothing_cross_entropy.1} parent=5 // pred_region
      %s100 = ssub.s32 %s8, 1
    $region12: #{label_smoothing_cross_entropy.1} parent=5 // pred_fallthru
      _
    %p101 = scmp.lt.s32.totalorder %s8, 2
    // Predicated region
    $region13: #{label_smoothing_cross_entropy.1} parent=5 // pred_check
      %p102 = pneg %p101
    $region14: #{label_smoothing_cross_entropy.1} parent=5 // pred_check_branch
      %104 = sbr.rel (%p102) target = $region16
    $region15: #{label_smoothing_cross_entropy.1} parent=5 // pred_region
      // Predicated region
      $region17: #{label_smoothing_cross_entropy.1} parent=15 // pred_check
        %p105 = pneg %p28
      $region18: #{label_smoothing_cross_entropy.1} parent=15 // pred_check_branch
        %107 = sbr.rel (%p105) target = $region20
      $region19: #{label_smoothing_cross_entropy.1} parent=15 // pred_region
        %p108 = scmp.lt.s32.totalorder %s8, 1
        %s109 = scalar_select %p108, %s8, 1
        %s110 = smul.addr %s109, 8
        %s111 = scalar_lea.vmem %s0, %s110
      $region20: #{label_smoothing_cross_entropy.1} parent=15 // pred_fallthru
        _
      // Predicated region
      $region21: #{label_smoothing_cross_entropy.1} parent=15 // pred_check
        %p112 = pneg %p54
      $region22: #{label_smoothing_cross_entropy.1} parent=15 // pred_check_branch
        %114 = sbr.rel (%p112) target = $region24
      $region23: #{label_smoothing_cross_entropy.1} parent=15 // pred_region
        %p115 = scmp.lt.s32.totalorder %s8, 1
        %s116 = scalar_select %p115, %s8, 1
        %s117 = smul.addr %s116, 8
        %s118 = scalar_lea.vmem %s1, %s117
      $region24: #{label_smoothing_cross_entropy.1} parent=15 // pred_fallthru
        _
    $region16: #{label_smoothing_cross_entropy.1} parent=5 // pred_fallthru
      _
    %p119 = scmp.le.s32.totalorder 1, %s8
    %p120 = scmp.lt.s32.totalorder %s8, 3
    %p121 = pnand %p119, %p120
    %p122 = pneg %p121
    // Predicated region
    $region25: #{label_smoothing_cross_entropy.1} parent=5 // pred_check
      _
    $region26: #{label_smoothing_cross_entropy.1} parent=5 // pred_check_branch
      %124 = sbr.rel (%p121) target = $region28
    $region27: #{label_smoothing_cross_entropy.1} parent=5 // pred_region
      %s125 = ssub.s32 %s8, 1
      %p126 = scmp.lt.s32.totalorder %s13, 1
      %s127 = scalar_select %p126, %s13, 1
      %s128 = smul.addr %s127, 8
      %s129 = scalar_lea.vmem %s0, %s128
      %p130 = pneg %p34
      %p131 = pneg %p31
      %p132 = scmp.lt.s32.totalorder %s13, 1
      %s133 = scalar_select %p132, %s13, 1
      %s134 = smul.addr %s133, 8
      %s135 = scalar_lea.vmem %s1, %s134
      %p136 = pneg %p60
      %p137 = pneg %p57
      %p138 = pneg %p86
      %p139 = pneg %p83
      %p140 = scmp.lt.s32.totalorder %s13, 1
      %s141 = scalar_select %p140, %s13, 1
      %s142 = smul.addr %s141, 8
      %s143 = scalar_lea.vmem %s2, %s142
      %p144 = scmp.lt.s32.totalorder %s13, 1
      %s145 = scalar_select %p144, %s13, 1
      %s146 = smul.addr %s145, 8
      %s147 = scalar_lea.vmem %s0, %s146
      %p148 = scmp.lt.s32.totalorder %s13, 1
      %s149 = scalar_select %p148, %s13, 1
      %s150 = smul.addr %s149, 8
      %s151 = scalar_lea.vmem %s1, %s150
      %p152 = scmp.lt.s32.totalorder %s13, 1
      %s153 = scalar_select %p152, %s13, 1
      %s154 = smul.addr %s153, 8
      %s155 = scalar_lea.vmem %s2, %s154
      %v156 = vld [vmem:[%s147] sm:$0xff]
      %v157 = vld [vmem:[%s151] sm:$0xff]
      %158 = vmax.xlane.f32.xlu0 %v156
      %v159 = vpop.xlane.xlu0 %158
      %v160 = vsub.f32 %v156, %v159
      %v161 = vmul.f32 %v160, 1.442695
      %v162 = vpow.pop %v161
      %163 = vadd.xlane.f32.xlu0 %v162
      %v164 = vpop.xlane.xlu0 %163
      %v165 = vlog2.pop %v164
      %v166 = vmul.f32 %v165, 0.6931472
      %v167 = vadd.f32 %v159, %v166
      %v168 = vlaneseq
      %v169 = vand.u32 %v168, 127
      %170 = vset.pattern.permute.xlu0 0
      %171 = vperm.xlu0 %170, %v157
      %v172 = vpop.permute.xlu0 %171
      %vm173 = vcmp.eq.s32.totalorder %v169, %v172
      %v174 = vsel %vm173, 0.9007812, 0.00078125
      %v175 = vmul.f32 %v156, %v174
      %176 = vadd.xlane.f32.xlu0 %v175
      %v177 = vpop.xlane.xlu0 %176
      %v178 = vsub.f32 %v167, %v177
      %s179 = smul.u32 %s13, 8
      %v180 = vlaneseq
      %v181 = vshrl.u32 %v180, 7
      %v182 = vstv %s179
      %v183 = vadd.s32 %v182, %v181
      %vm184 = vcmp.lt.s32.totalorder %v183, 16
      %v185 = vsel %vm184, %v178, 0.0
      %vm186 = vcmask 7168
      %187 = vst.msk [vmem:[%s155] sm:$0xff] %vm186, %v185
      %p188 = scmp.lt.s32.totalorder %s13, 1
      %s189 = scalar_select %p188, %s13, 1
      %s190 = smul.addr %s189, 8
      %s191 = scalar_lea.vmem %s2, %s190
      // Predicated region
      $region29: #{label_smoothing_cross_entropy.1} parent=27 // pred_check
        %p192 = pneg %p83
      $region30: #{label_smoothing_cross_entropy.1} parent=27 // pred_check_branch
        %194 = sbr.rel (%p192) target = $region32
      $region31: #{label_smoothing_cross_entropy.1} parent=27 // pred_region
        _
      $region32: #{label_smoothing_cross_entropy.1} parent=27 // pred_fallthru
        _
    $region28: #{label_smoothing_cross_entropy.1} parent=5 // pred_fallthru
      _
    %p195 = scmp.le.s32.totalorder 2, %s8
    // Predicated region
    $region33: #{label_smoothing_cross_entropy.1} parent=5 // pred_check
      %p196 = pneg %p195
    $region34: #{label_smoothing_cross_entropy.1} parent=5 // pred_check_branch
      %198 = sbr.rel (%p196) target = $region36
    $region35: #{label_smoothing_cross_entropy.1} parent=5 // pred_region
      %s199 = ssub.s32 %s8, 2
      // Predicated region
      $region37: #{label_smoothing_cross_entropy.1} parent=35 // pred_check
        %p200 = pneg %p89
      $region38: #{label_smoothing_cross_entropy.1} parent=35 // pred_check_branch
        %202 = sbr.rel (%p200) target = $region40
      $region39: #{label_smoothing_cross_entropy.1} parent=35 // pred_region
        %p203 = scmp.lt.s32.totalorder %s14, 1
        %s204 = scalar_select %p203, %s14, 1
        %s205 = smul.addr %s204, 8
        %s206 = scalar_lea.vmem %s2, %s205
      $region40: #{label_smoothing_cross_entropy.1} parent=35 // pred_fallthru
        _
    $region36: #{label_smoothing_cross_entropy.1} parent=5 // pred_fallthru
      _
  $region6: #{label_smoothing_cross_entropy.1} parent=0 // loop_footer
    %s12 = sadd.s32 1, %s8
  $region7: #{label_smoothing_cross_entropy.1} parent=0 // loop_footer_branch
    %7 = sbr.rel target = $region3
  $region8: #{label_smoothing_cross_entropy.1} parent=0 // loop_exit
    _

</llo_original>
